<compile_context>
chip_gen: v7x
topology: tpu7x:2x2x1
jax: 0.10.0
libtpu: 0.0.40
codegen_flags: <defaults>
</compile_context>

<pallas_src>
import functools

import jax
import jax.numpy as jnp
from jax.experimental import pallas as pl
from jax.experimental.pallas import tpu as pltpu


def _round_up(n, m):
    return ((n + m - 1) // m) * m


def _mlp_kernel(x_ref, w1_ref, b1_ref, w2_ref, b2_ref,
                w3_ref, b3_ref, w4_ref, b4_ref, o_ref):
    # x tile: (TB, 36) f32.  Weights are bf16; biases f32.
    x = x_ref[...].astype(jnp.float32)

    # F.normalize: x * rsqrt(max(||x||^2, eps^2)) along last dim.
    sq = jnp.sum(x * x, axis=-1, keepdims=True)
    x = x * jax.lax.rsqrt(jnp.maximum(sq, 1e-24))

    # fc1 + ReLU   (36 -> 128); bf16 MXU operands, f32 accumulate/elementwise.
    h = jnp.dot(x.astype(jnp.bfloat16), w1_ref[...],
                preferred_element_type=jnp.float32) + b1_ref[...]
    h = jnp.maximum(h, 0.0)
    # dropout1: identity (eval mode)

    # fc2 + ReLU   (128 -> 128)
    h = jnp.dot(h.astype(jnp.bfloat16), w2_ref[...],
                preferred_element_type=jnp.float32) + b2_ref[...]
    h = jnp.maximum(h, 0.0)
    # dropout2: identity (eval mode)

    # fc3 + ReLU   (128 -> 64)
    h = jnp.dot(h.astype(jnp.bfloat16), w3_ref[...],
                preferred_element_type=jnp.float32) + b3_ref[...]
    h = jnp.maximum(h, 0.0)
    # dropout3: identity (eval mode)

    # out          (64 -> 5)
    o = jnp.dot(h.astype(jnp.bfloat16), w4_ref[...],
                preferred_element_type=jnp.float32) + b4_ref[...]
    o_ref[...] = o.astype(o_ref.dtype)


def _pick_tile(B, tile_b):
    """Batch tile: big (amortizes per-step overhead), multiple of 16 when
    possible, never padded far past a tiny batch, and split in two for
    single-tile batches so v7x's two TensorCores both get work."""
    tb = int(min(tile_b, _round_up(B, 16), _round_up(B, 8)))
    if B >= 32 and pl.cdiv(B, tb) < 2:
        tb = int(min(tb, _round_up(pl.cdiv(B, 2), 16)))
    return tb


@functools.partial(jax.jit, static_argnames=("tile_b",))
def net_forward(x, params, *, tile_b=4096):
    """Forward pass.  `params` should come from `prepare_params` (bf16 weights,
    f32 (1, out) biases); f32 weights also work (cast once inside the jit)."""
    (w1, b1), (w2, b2), (w3, b3), (w4, b4) = params
    B, F_in = x.shape
    out_dim = w4.shape[1]  # 5

    # No-ops when params were prepared (already bf16) outside the call path.
    w1b = w1.astype(jnp.bfloat16)
    w2b = w2.astype(jnp.bfloat16)
    w3b = w3.astype(jnp.bfloat16)
    w4b = w4.astype(jnp.bfloat16)

    tb = _pick_tile(B, tile_b)
    grid = (pl.cdiv(B, tb),)

    # Weights / biases: full blocks, same block every grid step -> VMEM-resident.
    resident = lambda shape: pl.BlockSpec(shape, lambda i: (0,) * len(shape))

    return pl.pallas_call(
        _mlp_kernel,
        out_shape=jax.ShapeDtypeStruct((B, out_dim), jnp.float32),
        grid=grid,
        in_specs=[
            pl.BlockSpec((tb, F_in), lambda i: (i, 0)),
            resident(w1b.shape), resident(b1.shape),
            resident(w2b.shape), resident(b2.shape),
            resident(w3b.shape), resident(b3.shape),
            resident(w4b.shape), resident(b4.shape),
        ],
        out_specs=pl.BlockSpec((tb, out_dim), lambda i: (i, 0)),
        compiler_params=pltpu.CompilerParams(
            dimension_semantics=("parallel",),
            # Raise v5e's 16 MiB scoped default so tb=4096 fits; stays well
            # under v7x's 64 MiB physical VMEM.
            vmem_limit_bytes=48 * 1024 * 1024,
        ),
    )(x, w1b, b1, w2b, b2, w3b, b3, w4b, b4)


def init_params(key):
    """Deterministic init mimicking nn.Linear default (uniform +-1/sqrt(fan_in)).

    Weights are stored transposed, shape (in_features, out_features); biases
    are kept 2D (1, out) for TPU layout.  Returned in f32 (master copies).
    """
    dims = [(36, 128), (128, 128), (128, 64), (64, 5)]
    params = []
    for (fan_in, fan_out) in dims:
        key, kw, kb = jax.random.split(key, 3)
        bound = 1.0 / (fan_in ** 0.5)
        w = jax.random.uniform(kw, (fan_in, fan_out), jnp.float32, -bound, bound)
        b = jax.random.uniform(kb, (1, fan_out), jnp.float32, -bound, bound)
        params.append((w, b))
    return params


def prepare_params(params):
    """One-time conversion of master f32 params to the kernel's compute dtypes
    (bf16 weights, f32 biases).  Do this OUTSIDE the per-call path."""
    return tuple((w.astype(jnp.bfloat16), b.astype(jnp.float32))
                 for (w, b) in params)


def reference_forward(x, params, mxu_dtype=jnp.float32):
    """Plain-JAX reference of the PyTorch forward for sanity checking.

    `mxu_dtype=jnp.bfloat16` mirrors the kernel's mixed-precision matmuls.
    """
    (w1, b1), (w2, b2), (w3, b3), (w4, b4) = params
    sq = jnp.sum(x * x, axis=-1, keepdims=True)
    h = x * jax.lax.rsqrt(jnp.maximum(sq, 1e-24))

    def lin(h, w, b):
        return jnp.dot(h.astype(mxu_dtype), w.astype(mxu_dtype),
                       preferred_element_type=jnp.float32) + b

    h = jnp.maximum(lin(h, w1, b1), 0.0)
    h = jnp.maximum(lin(h, w2, b2), 0.0)
    h = jnp.maximum(lin(h, w3, b3), 0.0)
    return lin(h, w4, b4)


if __name__ == "__main__":
    key = jax.random.PRNGKey(0)
    key, kx, kx2 = jax.random.split(key, 3)

    params_f32 = init_params(key)
    params = prepare_params(params_f32)   # bf16 weights, converted once

    # Small demo batch.
    B = 8
    x = jax.random.normal(kx, (B, 36), jnp.float32)
    out = jax.block_until_ready(net_forward(x, params))
    assert out.shape == (B, 5), out.shape

    # Tight check vs. a reference that uses the same bf16 MXU operands.
    ref_mixed = reference_forward(x, params_f32, mxu_dtype=jnp.bfloat16)
    assert jnp.allclose(out, ref_mixed, atol=1e-2, rtol=1e-2), (
        float(jnp.max(jnp.abs(out - ref_mixed))))

    # Looser check vs. the full-f32 PyTorch-equivalent forward.
    ref_f32 = reference_forward(x, params_f32, mxu_dtype=jnp.float32)
    assert jnp.allclose(out, ref_f32, atol=5e-2, rtol=5e-2), (
        float(jnp.max(jnp.abs(out - ref_f32))))

    # Second small case exercising a multi-step grid + ragged last batch block
    # (B=48 -> tb=32, grid=(2,), last block has 16 valid rows).
    B2 = 48
    x2 = jax.random.normal(kx2, (B2, 36), jnp.float32)
    out2 = jax.block_until_ready(net_forward(x2, params))
    ref2 = reference_forward(x2, params_f32, mxu_dtype=jnp.bfloat16)
    assert out2.shape == (B2, 5), out2.shape
    assert jnp.allclose(out2, ref2, atol=1e-2, rtol=1e-2), (
        float(jnp.max(jnp.abs(out2 - ref2))))

    print("KERNEL_OK")
</pallas_src>

<mosaic_0001>
module attributes {stable_mosaic.version = 11 : i64} {
  func.func @_mlp_kernel(%arg0: i32, %arg1: memref<8x36xf32, #tpu.memory_space<vmem>>, %arg2: memref<36x128xbf16, #tpu.memory_space<vmem>>, %arg3: memref<1x128xf32, #tpu.memory_space<vmem>>, %arg4: memref<128x128xbf16, #tpu.memory_space<vmem>>, %arg5: memref<1x128xf32, #tpu.memory_space<vmem>>, %arg6: memref<128x64xbf16, #tpu.memory_space<vmem>>, %arg7: memref<1x64xf32, #tpu.memory_space<vmem>>, %arg8: memref<64x5xbf16, #tpu.memory_space<vmem>>, %arg9: memref<1x5xf32, #tpu.memory_space<vmem>>, %arg10: memref<8x5xf32, #tpu.memory_space<vmem>>) attributes {dimension_semantics = [#tpu.dimension_semantics<parallel>], iteration_bounds = array<i64: 1>, scalar_prefetch = 0 : i64, scratch_operands = 0 : i64, tpu.core_type = #tpu.core_type<tc>, window_params = [{transform_indices = @transform_0, window_bounds = array<i64: 8, 36>}, {pipeline_mode = #tpu.pipeline_mode<synchronous>, transform_indices = @transform_1, window_bounds = array<i64: 36, 128>}, {pipeline_mode = #tpu.pipeline_mode<synchronous>, transform_indices = @transform_2, window_bounds = array<i64: 1, 128>}, {pipeline_mode = #tpu.pipeline_mode<synchronous>, transform_indices = @transform_3, window_bounds = array<i64: 128, 128>}, {pipeline_mode = #tpu.pipeline_mode<synchronous>, transform_indices = @transform_4, window_bounds = array<i64: 1, 128>}, {pipeline_mode = #tpu.pipeline_mode<synchronous>, transform_indices = @transform_5, window_bounds = array<i64: 128, 64>}, {pipeline_mode = #tpu.pipeline_mode<synchronous>, transform_indices = @transform_6, window_bounds = array<i64: 1, 64>}, {pipeline_mode = #tpu.pipeline_mode<synchronous>, transform_indices = @transform_7, window_bounds = array<i64: 64, 5>}, {pipeline_mode = #tpu.pipeline_mode<synchronous>, transform_indices = @transform_8, window_bounds = array<i64: 1, 5>}, {transform_indices = @transform_9, window_bounds = array<i64: 8, 5>}]} {
    %c0 = arith.constant 0 : index
    %c0_0 = arith.constant 0 : index
    %0 = vector.load %arg1[%c0, %c0_0] : memref<8x36xf32, #tpu.memory_space<vmem>>, vector<8x36xf32>
    %1 = arith.mulf %0, %0 : vector<8x36xf32>
    %cst = arith.constant dense<0.000000e+00> : vector<8xf32>
    %2 = vector.multi_reduction <add>, %1, %cst [1] : vector<8x36xf32> to vector<8xf32>
    %3 = vector.shape_cast %2 : vector<8xf32> to vector<8x1xf32>
    %cst_1 = arith.constant 1.000000e-24 : f32
    %4 = vector.broadcast %cst_1 : f32 to vector<8x1xf32>
    %5 = arith.maximumf %3, %4 : vector<8x1xf32>
    %6 = math.rsqrt %5 : vector<8x1xf32>
    %7 = vector.broadcast %6 : vector<8x1xf32> to vector<8x36xf32>
    %8 = arith.mulf %0, %7 : vector<8x36xf32>
    %9 = arith.truncf %8 : vector<8x36xf32> to vector<8x36xbf16>
    %c0_2 = arith.constant 0 : index
    %c0_3 = arith.constant 0 : index
    %10 = vector.load %arg2[%c0_2, %c0_3] : memref<36x128xbf16, #tpu.memory_space<vmem>>, vector<36x128xbf16>
    %cst_4 = arith.constant dense<0.000000e+00> : vector<8x128xf32>
    %11 = tpu.matmul %9, %10, %cst_4 {dimension_numbers = #tpu.dot_dimension_numbers<[1], [0], [0], [1], [0, 0, 1, 1], [], []>} : vector<8x36xbf16>, vector<36x128xbf16>, vector<8x128xf32> -> vector<8x128xf32>
    %c0_5 = arith.constant 0 : index
    %c0_6 = arith.constant 0 : index
    %12 = vector.load %arg3[%c0_5, %c0_6] : memref<1x128xf32, #tpu.memory_space<vmem>>, vector<1x128xf32>
    %13 = vector.broadcast %12 : vector<1x128xf32> to vector<8x128xf32>
    %14 = arith.addf %11, %13 : vector<8x128xf32>
    %cst_7 = arith.constant 0.000000e+00 : f32
    %15 = vector.broadcast %cst_7 : f32 to vector<8x128xf32>
    %16 = arith.maximumf %14, %15 : vector<8x128xf32>
    %17 = arith.truncf %16 : vector<8x128xf32> to vector<8x128xbf16>
    %c0_8 = arith.constant 0 : index
    %c0_9 = arith.constant 0 : index
    %18 = vector.load %arg4[%c0_8, %c0_9] : memref<128x128xbf16, #tpu.memory_space<vmem>>, vector<128x128xbf16>
    %cst_10 = arith.constant dense<0.000000e+00> : vector<8x128xf32>
    %19 = tpu.matmul %17, %18, %cst_10 {dimension_numbers = #tpu.dot_dimension_numbers<[1], [0], [0], [1], [0, 0, 1, 1], [], []>} : vector<8x128xbf16>, vector<128x128xbf16>, vector<8x128xf32> -> vector<8x128xf32>
    %c0_11 = arith.constant 0 : index
    %c0_12 = arith.constant 0 : index
    %20 = vector.load %arg5[%c0_11, %c0_12] : memref<1x128xf32, #tpu.memory_space<vmem>>, vector<1x128xf32>
    %21 = vector.broadcast %20 : vector<1x128xf32> to vector<8x128xf32>
    %22 = arith.addf %19, %21 : vector<8x128xf32>
    %cst_13 = arith.constant 0.000000e+00 : f32
    %23 = vector.broadcast %cst_13 : f32 to vector<8x128xf32>
    %24 = arith.maximumf %22, %23 : vector<8x128xf32>
    %25 = arith.truncf %24 : vector<8x128xf32> to vector<8x128xbf16>
    %c0_14 = arith.constant 0 : index
    %c0_15 = arith.constant 0 : index
    %26 = vector.load %arg6[%c0_14, %c0_15] : memref<128x64xbf16, #tpu.memory_space<vmem>>, vector<128x64xbf16>
    %cst_16 = arith.constant dense<0.000000e+00> : vector<8x64xf32>
    %27 = tpu.matmul %25, %26, %cst_16 {dimension_numbers = #tpu.dot_dimension_numbers<[1], [0], [0], [1], [0, 0, 1, 1], [], []>} : vector<8x128xbf16>, vector<128x64xbf16>, vector<8x64xf32> -> vector<8x64xf32>
    %c0_17 = arith.constant 0 : index
    %c0_18 = arith.constant 0 : index
    %28 = vector.load %arg7[%c0_17, %c0_18] : memref<1x64xf32, #tpu.memory_space<vmem>>, vector<1x64xf32>
    %29 = vector.broadcast %28 : vector<1x64xf32> to vector<8x64xf32>
    %30 = arith.addf %27, %29 : vector<8x64xf32>
    %cst_19 = arith.constant 0.000000e+00 : f32
    %31 = vector.broadcast %cst_19 : f32 to vector<8x64xf32>
    %32 = arith.maximumf %30, %31 : vector<8x64xf32>
    %33 = arith.truncf %32 : vector<8x64xf32> to vector<8x64xbf16>
    %c0_20 = arith.constant 0 : index
    %c0_21 = arith.constant 0 : index
    %34 = vector.load %arg8[%c0_20, %c0_21] : memref<64x5xbf16, #tpu.memory_space<vmem>>, vector<64x5xbf16>
    %cst_22 = arith.constant dense<0.000000e+00> : vector<8x5xf32>
    %35 = tpu.matmul %33, %34, %cst_22 {dimension_numbers = #tpu.dot_dimension_numbers<[1], [0], [0], [1], [0, 0, 1, 1], [], []>} : vector<8x64xbf16>, vector<64x5xbf16>, vector<8x5xf32> -> vector<8x5xf32>
    %c0_23 = arith.constant 0 : index
    %c0_24 = arith.constant 0 : index
    %36 = vector.load %arg9[%c0_23, %c0_24] : memref<1x5xf32, #tpu.memory_space<vmem>>, vector<1x5xf32>
    %37 = vector.broadcast %36 : vector<1x5xf32> to vector<8x5xf32>
    %38 = arith.addf %35, %37 : vector<8x5xf32>
    %c0_25 = arith.constant 0 : index
    %c0_26 = arith.constant 0 : index
    %39 = vector.load %arg10[%c0_25, %c0_26] : memref<8x5xf32, #tpu.memory_space<vmem>>, vector<8x5xf32>
    tpu.vector_store %arg10[%c0_25, %c0_26], %38 {strides = array<i32>} : memref<8x5xf32, #tpu.memory_space<vmem>>, vector<8x5xf32>,
    return
  }
  func.func @transform_0(%arg0: i32) -> (i32, i32) {
    %c0_i32 = arith.constant 0 : i32
    %c0_i32_0 = arith.constant 0 : i32
    return %arg0, %c0_i32 : i32, i32
  }
  func.func @transform_1(%arg0: i32) -> (i32, i32) {
    %c0_i32 = arith.constant 0 : i32
    %c0_i32_0 = arith.constant 0 : i32
    %c0_i32_1 = arith.constant 0 : i32
    return %c0_i32, %c0_i32_0 : i32, i32
  }
  func.func @transform_2(%arg0: i32) -> (i32, i32) {
    %c0_i32 = arith.constant 0 : i32
    %c0_i32_0 = arith.constant 0 : i32
    %c0_i32_1 = arith.constant 0 : i32
    return %c0_i32, %c0_i32_0 : i32, i32
  }
  func.func @transform_3(%arg0: i32) -> (i32, i32) {
    %c0_i32 = arith.constant 0 : i32
    %c0_i32_0 = arith.constant 0 : i32
    %c0_i32_1 = arith.constant 0 : i32
    return %c0_i32, %c0_i32_0 : i32, i32
  }
  func.func @transform_4(%arg0: i32) -> (i32, i32) {
    %c0_i32 = arith.constant 0 : i32
    %c0_i32_0 = arith.constant 0 : i32
    %c0_i32_1 = arith.constant 0 : i32
    return %c0_i32, %c0_i32_0 : i32, i32
  }
  func.func @transform_5(%arg0: i32) -> (i32, i32) {
    %c0_i32 = arith.constant 0 : i32
    %c0_i32_0 = arith.constant 0 : i32
    %c0_i32_1 = arith.constant 0 : i32
    return %c0_i32, %c0_i32_0 : i32, i32
  }
  func.func @transform_6(%arg0: i32) -> (i32, i32) {
    %c0_i32 = arith.constant 0 : i32
    %c0_i32_0 = arith.constant 0 : i32
    %c0_i32_1 = arith.constant 0 : i32
    return %c0_i32, %c0_i32_0 : i32, i32
  }
  func.func @transform_7(%arg0: i32) -> (i32, i32) {
    %c0_i32 = arith.constant 0 : i32
    %c0_i32_0 = arith.constant 0 : i32
    %c0_i32_1 = arith.constant 0 : i32
    return %c0_i32, %c0_i32_0 : i32, i32
  }
  func.func @transform_8(%arg0: i32) -> (i32, i32) {
    %c0_i32 = arith.constant 0 : i32
    %c0_i32_0 = arith.constant 0 : i32
    %c0_i32_1 = arith.constant 0 : i32
    return %c0_i32, %c0_i32_0 : i32, i32
  }
  func.func @transform_9(%arg0: i32) -> (i32, i32) {
    %c0_i32 = arith.constant 0 : i32
    %c0_i32_0 = arith.constant 0 : i32
    return %arg0, %c0_i32 : i32, i32
  }
}

</mosaic_0001>

<llo_original>
// kernel: net_forward.1
$region0: #{net_forward.1}
  #allocation0 [shape = 'u32[]', space=smem, size = 0x4, offset = 0x4, fixed_abs, tag = 'smem constant byte address 0x4 - core index']
  #allocation1 [shape = 'u32[144,128]{1,0:T(1,128)}', space=vmem, size = 0x12000, scoped, tag = 'internal scratch']
  %s0 = inlined_call_operand.vmem [shape: f32[8,36], index: 0, kind: input, shape index: {}]
  %s1 = inlined_call_operand.vmem [shape: bf16[36,128], index: 1, kind: input, shape index: {}]
  %s2 = inlined_call_operand.vmem [shape: f32[1,128], index: 2, kind: input, shape index: {}]
  %s3 = inlined_call_operand.vmem [shape: bf16[128,128], index: 3, kind: input, shape index: {}]
  %s4 = inlined_call_operand.vmem [shape: f32[1,128], index: 4, kind: input, shape index: {}]
  %s5 = inlined_call_operand.vmem [shape: bf16[128,64], index: 5, kind: input, shape index: {}]
  %s6 = inlined_call_operand.vmem [shape: f32[1,64], index: 6, kind: input, shape index: {}]
  %s7 = inlined_call_operand.vmem [shape: bf16[64,5], index: 7, kind: input, shape index: {}]
  %s8 = inlined_call_operand.vmem [shape: f32[1,5], index: 8, kind: input, shape index: {}]
  %s9 = inlined_call_operand.hbm [shape: f32[8,5], index: 9, kind: output, shape index: {}]
  %s10 = sld [smem:[#allocation0]]
  $region46: #{net_forward.1} parent=0
    _
  %s12 = ssub.s32 1, %s10
  %s13 = scalar_select 0, %s12, %s10
  $region1: #{net_forward.1} parent=0
    #allocation2 [shape = 'u8[4096]{0}', space=vmem, size = 0x1000, scoped, tag = 'output window, operand 0, single buffered']
    #allocation3 [shape = 's32[1]{0}', space=sflag, size = 0x4, scoped, tag = 'scoped memory for net_forward.1']
    %14 = vsyncpa [#allocation3], 0
    // Predicated region
    $region2: #{net_forward.1} parent=1 // pred_check
      _
    $region3: #{net_forward.1} parent=1 // pred_check_branch
      %16 = sbr.rel (0) target = $region5
    $region4: #{net_forward.1} parent=1 // pred_region
      _
    $region5: #{net_forward.1} parent=1 // pred_fallthru
      _
    // Predicated region
    $region6: #{net_forward.1} parent=1 // pred_check
      _
    $region7: #{net_forward.1} parent=1 // pred_check_branch
      %18 = sbr.rel (0) target = $region9
    $region8: #{net_forward.1} parent=1 // pred_region
      _
    $region9: #{net_forward.1} parent=1 // pred_fallthru
      _
    // Predicated region
    $region10: #{net_forward.1} parent=1 // pred_check
      _
    $region11: #{net_forward.1} parent=1 // pred_check_branch
      %20 = sbr.rel (0) target = $region13
    $region12: #{net_forward.1} parent=1 // pred_region
      _
    $region13: #{net_forward.1} parent=1 // pred_fallthru
      _
    // Predicated region
    $region14: #{net_forward.1} parent=1 // pred_check
      _
    $region15: #{net_forward.1} parent=1 // pred_check_branch
      %22 = sbr.rel (0) target = $region17
    $region16: #{net_forward.1} parent=1 // pred_region
      _
    $region17: #{net_forward.1} parent=1 // pred_fallthru
      _
    // Predicated region
    $region18: #{net_forward.1} parent=1 // pred_check
      _
    $region19: #{net_forward.1} parent=1 // pred_check_branch
      %24 = sbr.rel (0) target = $region21
    $region20: #{net_forward.1} parent=1 // pred_region
      _
    $region21: #{net_forward.1} parent=1 // pred_fallthru
      _
    // Predicated region
    $region22: #{net_forward.1} parent=1 // pred_check
      _
    $region23: #{net_forward.1} parent=1 // pred_check_branch
      %26 = sbr.rel (0) target = $region25
    $region24: #{net_forward.1} parent=1 // pred_region
      _
    $region25: #{net_forward.1} parent=1 // pred_fallthru
      _
    // Predicated region
    $region26: #{net_forward.1} parent=1 // pred_check
      _
    $region27: #{net_forward.1} parent=1 // pred_check_branch
      %28 = sbr.rel (0) target = $region29
    $region28: #{net_forward.1} parent=1 // pred_region
      _
    $region29: #{net_forward.1} parent=1 // pred_fallthru
      _
    // Predicated region
    $region30: #{net_forward.1} parent=1 // pred_check
      _
    $region31: #{net_forward.1} parent=1 // pred_check_branch
      %30 = sbr.rel (0) target = $region33
    $region32: #{net_forward.1} parent=1 // pred_region
      _
    $region33: #{net_forward.1} parent=1 // pred_fallthru
      _
    // Predicated region
    $region34: #{net_forward.1} parent=1 // pred_check
      _
    $region35: #{net_forward.1} parent=1 // pred_check_branch
      %32 = sbr.rel (0) target = $region37
    $region36: #{net_forward.1} parent=1 // pred_region
      _
    $region37: #{net_forward.1} parent=1 // pred_fallthru
      _
    %v34 = vld [vmem:[%s0] sm:$0xff]
    %v35 = vmul.f32 %v34, %v34
    %vm36 = vcmask 293888
    %v37 = vsel %vm36, %v35, 0.0
    %38 = vadd.xlane.f32.xlu0 %v37
    %v39 = vpop.xlane.xlu0 %38
    %v40 = vmax.f32 %v39, 1e-24
    %v41 = vrsqrt.pop %v40
    %v42 = vmul.f32 %v34, %v41
    %v43 = vpack.c.bf16 %v42, %v42
    %v44 = vld [vmem:[%s1] sm:$0xf]
    %v45 = vld [vmem:[%s1 + $0x4] sm:$0xf]
    %v46 = vld [vmem:[%s1 + $0x8] sm:$0xf]
    %v47 = vld [vmem:[%s1 + $0xc] sm:$0xf]
    %v48 = vld [vmem:[%s1 + $0x10] sm:$0x3]
    %v49 = vld [vmem:[%s2] sm:$0x1]
    %v51 = vlaneseq
    %v52 = vshrl.u32 %v51, 7
    %v53 = vsub.s32 0, %v52
    %v54 = vrot.slane %v49, %v53
    %v61 = vunpack.c.l.b16 %v44
    %v62 = vunpack.c.l.b16 %v45
    %v63 = vunpack.c.l.b16 %v46
    %v64 = vunpack.c.l.b16 %v47
    %v65 = vunpack.c.l.b16 %v48
    %v66 = vpack.c.b16 %v62, %v61
    %v67 = vpack.c.b16 %v64, %v63
    %v68 = vpack.c.b16 %v65, %v65
    %v72 = vsel %vm36, %v43, 0
    %vm74 = vcmask 1041408
    %v76 = vsel %vm74, %v68, 0
    %78 = vmatprep.subr.bf16.mxu0 0
    %79 = vmatpush1.bf16.msra.mxu0 %v66
    %80 = vmatprep.subr.bf16.mxu0 0
    %81 = vmatpush1.bf16.msra.mxu0 %v67
    %82 = vmatprep.subr.bf16.mxu0 0
    %83 = vmatpush1.bf16.msra.mxu0 %v76
    %84 = vmatprep.subr.bf16.mxu0 0
    %85 = vmatpush1.bf16.msra.mxu0 0
    %86 = vmatprep.subr.bf16.mxu0 0
    %87 = vmatpush1.bf16.msra.mxu0 0
    %88 = vmatprep.subr.bf16.mxu0 0
    %89 = vmatpush1.bf16.msra.mxu0 0
    %90 = vmatprep.subr.bf16.mxu0 0
    %91 = vmatpush1.bf16.msra.mxu0 0
    %92 = vmatprep.subr.bf16.mxu0 0
    %93 = vmatpush1.bf16.msra.mxu0 0
    %94 = vmatprep.subr.bf16.mxu0 0
    %95 = vmatpush1.bf16.msra.mxu0 0
    %96 = vmatprep.subr.bf16.mxu0 0
    %97 = vmatpush1.bf16.msra.mxu0 0
    %98 = vmatprep.subr.bf16.mxu0 0
    %99 = vmatpush1.bf16.msra.mxu0 0
    %100 = vmatprep.subr.bf16.mxu0 0
    %101 = vmatpush1.bf16.msra.mxu0 0
    %102 = vmatprep.subr.bf16.mxu0 0
    %103 = vmatpush1.bf16.msra.mxu0 0
    %104 = vmatprep.subr.bf16.mxu0 0
    %105 = vmatpush1.bf16.msra.mxu0 0
    %106 = vmatprep.subr.bf16.mxu0 0
    %107 = vmatpush1.bf16.msra.mxu0 0
    %108 = vmatprep.subr.bf16.mxu0 0
    %109 = vmatpush1.bf16.msra.mxu0 0
    %110 = vmatprep.mubr.bf16.mxu0 0
    %111 = vmatmul.mubr.bf16.gmra.mrb[0].mxu0 %v72
    %v112 = vpop.f32.mrb[0].mxu0
    %v113 = vadd.f32 %v54, %v112
    %v114 = vpop.f32.mrb[0].mxu0
    %v115 = vpop.f32.mrb[0].mxu0
    %v116 = vpop.f32.mrb[0].mxu0
    %117 = vdwg.mxu0
    %v118 = vmax.f32 %v113, 0.0
    %v119 = vpack.c.bf16 %v118, %v118
    %v120 = vld [vmem:[%s3] sm:$0xf]
    %v121 = vld [vmem:[%s3 + $0x4] sm:$0xf]
    %v122 = vld [vmem:[%s3 + $0x8] sm:$0xf]
    %v123 = vld [vmem:[%s3 + $0xc] sm:$0xf]
    %v124 = vld [vmem:[%s3 + $0x10] sm:$0xf]
    %v125 = vld [vmem:[%s3 + $0x14] sm:$0xf]
    %v126 = vld [vmem:[%s3 + $0x18] sm:$0xf]
    %v127 = vld [vmem:[%s3 + $0x1c] sm:$0xf]
    %v128 = vld [vmem:[%s3 + $0x20] sm:$0xf]
    %v129 = vld [vmem:[%s3 + $0x24] sm:$0xf]
    %v130 = vld [vmem:[%s3 + $0x28] sm:$0xf]
    %v131 = vld [vmem:[%s3 + $0x2c] sm:$0xf]
    %v132 = vld [vmem:[%s3 + $0x30] sm:$0xf]
    %v133 = vld [vmem:[%s3 + $0x34] sm:$0xf]
    %v134 = vld [vmem:[%s3 + $0x38] sm:$0xf]
    %v135 = vld [vmem:[%s3 + $0x3c] sm:$0xf]
    %v136 = vld [vmem:[%s4] sm:$0x1]
    %v138 = vlaneseq
    %v139 = vshrl.u32 %v138, 7
    %v140 = vsub.s32 0, %v139
    %v141 = vrot.slane %v136, %v140
    %v159 = vunpack.c.l.b16 %v120
    %v160 = vunpack.c.l.b16 %v121
    %v161 = vunpack.c.l.b16 %v122
    %v162 = vunpack.c.l.b16 %v123
    %v163 = vunpack.c.l.b16 %v124
    %v164 = vunpack.c.l.b16 %v125
    %v165 = vunpack.c.l.b16 %v126
    %v166 = vunpack.c.l.b16 %v127
    %v167 = vunpack.c.l.b16 %v128
    %v168 = vunpack.c.l.b16 %v129
    %v169 = vunpack.c.l.b16 %v130
    %v170 = vunpack.c.l.b16 %v131
    %v171 = vunpack.c.l.b16 %v132
    %v172 = vunpack.c.l.b16 %v133
    %v173 = vunpack.c.l.b16 %v134
    %v174 = vunpack.c.l.b16 %v135
    %v175 = vpack.c.b16 %v160, %v159
    %v176 = vpack.c.b16 %v162, %v161
    %v177 = vpack.c.b16 %v164, %v163
    %v178 = vpack.c.b16 %v166, %v165
    %v179 = vpack.c.b16 %v168, %v167
    %v180 = vpack.c.b16 %v170, %v169
    %v181 = vpack.c.b16 %v172, %v171
    %v182 = vpack.c.b16 %v174, %v173
    %191 = vmatprep.subr.bf16.mxu0 0
    %192 = vmatpush1.bf16.msra.mxu0 %v175
    %193 = vmatprep.subr.bf16.mxu0 0
    %194 = vmatpush1.bf16.msra.mxu0 %v176
    %195 = vmatprep.subr.bf16.mxu0 0
    %196 = vmatpush1.bf16.msra.mxu0 %v177
    %197 = vmatprep.subr.bf16.mxu0 0
    %198 = vmatpush1.bf16.msra.mxu0 %v178
    %199 = vmatprep.subr.bf16.mxu0 0
    %200 = vmatpush1.bf16.msra.mxu0 %v179
    %201 = vmatprep.subr.bf16.mxu0 0
    %202 = vmatpush1.bf16.msra.mxu0 %v180
    %203 = vmatprep.subr.bf16.mxu0 0
    %204 = vmatpush1.bf16.msra.mxu0 %v181
    %205 = vmatprep.subr.bf16.mxu0 0
    %206 = vmatpush1.bf16.msra.mxu0 %v182
    %207 = vmatprep.subr.bf16.mxu0 0
    %208 = vmatpush1.bf16.msra.mxu0 0
    %209 = vmatprep.subr.bf16.mxu0 0
    %210 = vmatpush1.bf16.msra.mxu0 0
    %211 = vmatprep.subr.bf16.mxu0 0
    %212 = vmatpush1.bf16.msra.mxu0 0
    %213 = vmatprep.subr.bf16.mxu0 0
    %214 = vmatpush1.bf16.msra.mxu0 0
    %215 = vmatprep.subr.bf16.mxu0 0
    %216 = vmatpush1.bf16.msra.mxu0 0
    %217 = vmatprep.subr.bf16.mxu0 0
    %218 = vmatpush1.bf16.msra.mxu0 0
    %219 = vmatprep.subr.bf16.mxu0 0
    %220 = vmatpush1.bf16.msra.mxu0 0
    %221 = vmatprep.subr.bf16.mxu0 0
    %222 = vmatpush1.bf16.msra.mxu0 0
    %223 = vmatprep.mubr.bf16.mxu0 0
    %224 = vmatmul.mubr.bf16.gmra.mrb[0].mxu0 %v119
    %v225 = vpop.f32.mrb[0].mxu0
    %v226 = vadd.f32 %v141, %v225
    %v227 = vpop.f32.mrb[0].mxu0
    %v228 = vpop.f32.mrb[0].mxu0
    %v229 = vpop.f32.mrb[0].mxu0
    %230 = vdwg.mxu0
    %v231 = vmax.f32 %v226, 0.0
    %v232 = vpack.c.bf16 %v231, %v231
    %v233 = vld [vmem:[%s5] sm:$0xf]
    %v234 = vld [vmem:[%s5 + $0x4] sm:$0xf]
    %v235 = vld [vmem:[%s5 + $0x8] sm:$0xf]
    %v236 = vld [vmem:[%s5 + $0xc] sm:$0xf]
    %v237 = vld [vmem:[%s5 + $0x10] sm:$0xf]
    %v238 = vld [vmem:[%s5 + $0x14] sm:$0xf]
    %v239 = vld [vmem:[%s5 + $0x18] sm:$0xf]
    %v240 = vld [vmem:[%s5 + $0x1c] sm:$0xf]
    %v241 = vld [vmem:[%s5 + $0x20] sm:$0xf]
    %v242 = vld [vmem:[%s5 + $0x24] sm:$0xf]
    %v243 = vld [vmem:[%s5 + $0x28] sm:$0xf]
    %v244 = vld [vmem:[%s5 + $0x2c] sm:$0xf]
    %v245 = vld [vmem:[%s5 + $0x30] sm:$0xf]
    %v246 = vld [vmem:[%s5 + $0x34] sm:$0xf]
    %v247 = vld [vmem:[%s5 + $0x38] sm:$0xf]
    %v248 = vld [vmem:[%s5 + $0x3c] sm:$0xf]
    %v249 = vld [vmem:[%s6] sm:$0x1]
    %v251 = vlaneseq
    %v252 = vshrl.u32 %v251, 7
    %v253 = vsub.s32 0, %v252
    %v254 = vrot.slane %v249, %v253
    %v272 = vunpack.c.l.b16 %v233
    %v273 = vunpack.c.l.b16 %v234
    %v274 = vunpack.c.l.b16 %v235
    %v275 = vunpack.c.l.b16 %v236
    %v276 = vunpack.c.l.b16 %v237
    %v277 = vunpack.c.l.b16 %v238
    %v278 = vunpack.c.l.b16 %v239
    %v279 = vunpack.c.l.b16 %v240
    %v280 = vunpack.c.l.b16 %v241
    %v281 = vunpack.c.l.b16 %v242
    %v282 = vunpack.c.l.b16 %v243
    %v283 = vunpack.c.l.b16 %v244
    %v284 = vunpack.c.l.b16 %v245
    %v285 = vunpack.c.l.b16 %v246
    %v286 = vunpack.c.l.b16 %v247
    %v287 = vunpack.c.l.b16 %v248
    %v288 = vpack.c.b16 %v273, %v272
    %v289 = vpack.c.b16 %v275, %v274
    %v290 = vpack.c.b16 %v277, %v276
    %v291 = vpack.c.b16 %v279, %v278
    %v292 = vpack.c.b16 %v281, %v280
    %v293 = vpack.c.b16 %v283, %v282
    %v294 = vpack.c.b16 %v285, %v284
    %v295 = vpack.c.b16 %v287, %v286
    %304 = vmatprep.subr.bf16.mxu0 0
    %305 = vmatpush1.bf16.msra.mxu0 %v288
    %306 = vmatprep.subr.bf16.mxu0 0
    %307 = vmatpush1.bf16.msra.mxu0 %v289
    %308 = vmatprep.subr.bf16.mxu0 0
    %309 = vmatpush1.bf16.msra.mxu0 %v290
    %310 = vmatprep.subr.bf16.mxu0 0
    %311 = vmatpush1.bf16.msra.mxu0 %v291
    %312 = vmatprep.subr.bf16.mxu0 0
    %313 = vmatpush1.bf16.msra.mxu0 %v292
    %314 = vmatprep.subr.bf16.mxu0 0
    %315 = vmatpush1.bf16.msra.mxu0 %v293
    %316 = vmatprep.subr.bf16.mxu0 0
    %317 = vmatpush1.bf16.msra.mxu0 %v294
    %318 = vmatprep.subr.bf16.mxu0 0
    %319 = vmatpush1.bf16.msra.mxu0 %v295
    %320 = vmatprep.subr.bf16.mxu0 0
    %321 = vmatpush1.bf16.msra.mxu0 0
    %322 = vmatprep.subr.bf16.mxu0 0
    %323 = vmatpush1.bf16.msra.mxu0 0
    %324 = vmatprep.subr.bf16.mxu0 0
    %325 = vmatpush1.bf16.msra.mxu0 0
    %326 = vmatprep.subr.bf16.mxu0 0
    %327 = vmatpush1.bf16.msra.mxu0 0
    %328 = vmatprep.subr.bf16.mxu0 0
    %329 = vmatpush1.bf16.msra.mxu0 0
    %330 = vmatprep.subr.bf16.mxu0 0
    %331 = vmatpush1.bf16.msra.mxu0 0
    %332 = vmatprep.subr.bf16.mxu0 0
    %333 = vmatpush1.bf16.msra.mxu0 0
    %334 = vmatprep.subr.bf16.mxu0 0
    %335 = vmatpush1.bf16.msra.mxu0 0
    %336 = vmatprep.mubr.bf16.mxu0 0
    %337 = vmatmul.mubr.bf16.gmra.mrb[0].mxu0 %v232
    %v338 = vpop.f32.mrb[0].mxu0
    %v339 = vadd.f32 %v254, %v338
    %v340 = vpop.f32.mrb[0].mxu0
    %v341 = vpop.f32.mrb[0].mxu0
    %v342 = vpop.f32.mrb[0].mxu0
    %343 = vdwg.mxu0
    %v344 = vmax.f32 %v339, 0.0
    %v345 = vpack.c.bf16 %v344, %v344
    %v346 = vld [vmem:[%s7] sm:$0xf]
    %v347 = vld [vmem:[%s7 + $0x4] sm:$0xf]
    %v348 = vld [vmem:[%s7 + $0x8] sm:$0xf]
    %v349 = vld [vmem:[%s7 + $0xc] sm:$0xf]
    %v350 = vld [vmem:[%s7 + $0x10] sm:$0xf]
    %v351 = vld [vmem:[%s7 + $0x14] sm:$0xf]
    %v352 = vld [vmem:[%s7 + $0x18] sm:$0xf]
    %v353 = vld [vmem:[%s7 + $0x1c] sm:$0xf]
    %v354 = vld [vmem:[%s8] sm:$0x1]
    %v356 = vlaneseq
    %v357 = vshrl.u32 %v356, 7
    %v358 = vsub.s32 0, %v357
    %v359 = vrot.slane %v354, %v358
    %v369 = vunpack.c.l.b16 %v346
    %v370 = vunpack.c.l.b16 %v347
    %v371 = vunpack.c.l.b16 %v348
    %v372 = vunpack.c.l.b16 %v349
    %v373 = vunpack.c.l.b16 %v350
    %v374 = vunpack.c.l.b16 %v351
    %v375 = vunpack.c.l.b16 %v352
    %v376 = vunpack.c.l.b16 %v353
    %v377 = vpack.c.b16 %v370, %v369
    %v378 = vpack.c.b16 %v372, %v371
    %v379 = vpack.c.b16 %v374, %v373
    %v380 = vpack.c.b16 %v376, %v375
    %vm385 = vcmask 523264
    %v387 = vsel %vm385, %v345, 0
    %389 = vmatprep.subr.bf16.mxu0 0
    %390 = vmatpush1.bf16.msra.mxu0 %v377
    %391 = vmatprep.subr.bf16.mxu0 0
    %392 = vmatpush1.bf16.msra.mxu0 %v378
    %393 = vmatprep.subr.bf16.mxu0 0
    %394 = vmatpush1.bf16.msra.mxu0 %v379
    %395 = vmatprep.subr.bf16.mxu0 0
    %396 = vmatpush1.bf16.msra.mxu0 %v380
    %397 = vmatprep.subr.bf16.mxu0 0
    %398 = vmatpush1.bf16.msra.mxu0 0
    %399 = vmatprep.subr.bf16.mxu0 0
    %400 = vmatpush1.bf16.msra.mxu0 0
    %401 = vmatprep.subr.bf16.mxu0 0
    %402 = vmatpush1.bf16.msra.mxu0 0
    %403 = vmatprep.subr.bf16.mxu0 0
    %404 = vmatpush1.bf16.msra.mxu0 0
    %405 = vmatprep.subr.bf16.mxu0 0
    %406 = vmatpush1.bf16.msra.mxu0 0
    %407 = vmatprep.subr.bf16.mxu0 0
    %408 = vmatpush1.bf16.msra.mxu0 0
    %409 = vmatprep.subr.bf16.mxu0 0
    %410 = vmatpush1.bf16.msra.mxu0 0
    %411 = vmatprep.subr.bf16.mxu0 0
    %412 = vmatpush1.bf16.msra.mxu0 0
    %413 = vmatprep.subr.bf16.mxu0 0
    %414 = vmatpush1.bf16.msra.mxu0 0
    %415 = vmatprep.subr.bf16.mxu0 0
    %416 = vmatpush1.bf16.msra.mxu0 0
    %417 = vmatprep.subr.bf16.mxu0 0
    %418 = vmatpush1.bf16.msra.mxu0 0
    %419 = vmatprep.subr.bf16.mxu0 0
    %420 = vmatpush1.bf16.msra.mxu0 0
    %421 = vmatprep.mubr.bf16.mxu0 0
    %422 = vmatmul.mubr.bf16.gmra.mrb[0].mxu0 %v387
    %v423 = vpop.f32.mrb[0].mxu0
    %v424 = vadd.f32 %v359, %v423
    %v425 = vpop.f32.mrb[0].mxu0
    %v426 = vpop.f32.mrb[0].mxu0
    %v427 = vpop.f32.mrb[0].mxu0
    %428 = vdwg.mxu0
    %vm429 = vcmask 39936
    %430 = vst.msk [vmem:[#allocation2] sm:$0xff] %vm429, %v424
    // Predicated region
    $region38: #{net_forward.1} parent=1 // pred_check
      _
    $region39: #{net_forward.1} parent=1 // pred_check_branch
      %432 = sbr.rel (0) target = $region41
    $region40: #{net_forward.1} parent=1 // pred_region
      %s434 = ssub.s32 128, 128
      %435 = vsyncadd [#allocation3], %s434
      %s437 = sshll.u32 [#allocation2], 4
      %s438 = int_to_ptr.vmem [resolvable:$true] %s437
      %440 = dma.vmem_to_hbm [thread:$0]  %s438, 128, %s9, [#allocation3]
    $region41: #{net_forward.1} parent=1 // pred_fallthru
      _
    // Predicated region
    $region42: #{net_forward.1} parent=1 // pred_check
      _
    $region43: #{net_forward.1} parent=1 // pred_check_branch
      %442 = sbr.rel (0) target = $region45
    $region44: #{net_forward.1} parent=1 // pred_region
      %443 = dma.done [#allocation3], 128
    $region45: #{net_forward.1} parent=1 // pred_fallthru
      _
    %444 = vsyncpa [#allocation3], 1

</llo_original>
